<compile_context>
chip_gen: v5e
topology: v5e:2x2
jax: 0.10.0
libtpu: 0.0.40
codegen_flags: <defaults>
</compile_context>

<pallas_src>
import jax
import jax.numpy as jnp
from jax.experimental import pallas as pl
from jax.experimental.pallas import tpu as pltpu

_LANE = 128
_SUBLANE = 8


def _complex_affine_kernel(coef_ref, x_ref, o_ref):
    """y = a*x + c on interleaved re/im f32 lanes.

    coef_ref: SMEM (4,) f32 = [a_re, a_im, c_re, c_im]
    x_ref / o_ref: VMEM (row_tile, 128) f32; even lanes = real, odd lanes = imag.
    """
    ar = coef_ref[0]
    ai = coef_ref[1]
    cr = coef_ref[2]
    ci = coef_ref[3]

    x = x_ref[...]
    lane = jax.lax.broadcasted_iota(jnp.int32, x.shape, 1)
    is_re = (lane % 2) == 0                      # even lanes hold the real part

    # partner[L] = x[L ^ 1]: the imaginary partner on real lanes and vice versa.
    # (roll by LANE-1 == roll by -1; avoids negative shifts.)
    partner = jnp.where(is_re,
                        pltpu.roll(x, _LANE - 1, axis=1),
                        pltpu.roll(x, 1, axis=1))

    # y_re = ar*xr - ai*xi + cr  (even lanes)     y_im = ar*xi + ai*xr + ci  (odd lanes)
    coef_b = jnp.where(is_re, -ai, ai)
    coef_c = jnp.where(is_re, cr, ci)
    o_ref[...] = ar * x + coef_b * partner + coef_c


def _as_interleaved_f32(x):
    """complex64 array -> flat f32 vector with values alternating (re, im)."""
    try:
        v = jax.lax.bitcast_convert_type(x, jnp.float32)      # free view, shape (..., 2)
    except Exception:                                         # complex bitcast unsupported
        v = jnp.stack([jnp.real(x), jnp.imag(x)], axis=-1).astype(jnp.float32)
    return v.reshape(-1)


def _from_interleaved_f32(flat, shape):
    """flat f32 vector with values alternating (re, im) -> complex64 array of `shape`."""
    v = flat.reshape(*shape, 2)
    try:
        return jax.lax.bitcast_convert_type(v, jnp.complex64)  # free view
    except Exception:
        return jax.lax.complex(v[..., 0], v[..., 1]).astype(jnp.complex64)


def basic_nn_forward(x, params, *, max_row_tile=4096, force_pallas=False):
    """Forward pass of BasicNN: fc2(fc1(x)) for complex64 x of shape (B, 1)."""
    w1, b1, w2, b2 = params      # (in, out) layout: w1 (1,64), b1 (64,), w2 (64,1), b2 (1,)
    x = x.astype(jnp.complex64)
    B = x.shape[0]

    # ---- exact collapse of the two linear layers to one complex affine map ----
    a = (w1 @ w2)[0, 0]              # complex scalar
    c = (b1 @ w2)[0] + b2[0]         # complex scalar

    # ---- small-batch fast path: one fused XLA elementwise pass, no launch/pack cost ----
    if B * x.shape[1] < 4096 and not force_pallas:
        return (a * x + c).astype(jnp.complex64)

    coef = jnp.stack(
        [jnp.real(a), jnp.imag(a), jnp.real(c), jnp.imag(c)]).astype(jnp.float32)

    # ---- lane-dense (rows, 128) f32 view with interleaved re/im lanes ----
    flat = _as_interleaved_f32(x)
    n_f32 = flat.shape[0]                                 # == 2 * B
    r0 = pl.cdiv(n_f32, _LANE)                            # 128-lane rows needed
    r0 = pl.cdiv(r0, _SUBLANE) * _SUBLANE                 # round to the (8,128) vreg tile
    if r0 >= 2 * _SUBLANE:
        # >= 2 grid steps so v7x's two TensorCores both get work; blocks <= max_row_tile.
        num_tiles = max(2, pl.cdiv(r0, max_row_tile))
    else:
        num_tiles = 1
    row_tile = pl.cdiv(pl.cdiv(r0, num_tiles), _SUBLANE) * _SUBLANE
    rows = num_tiles * row_tile
    padded = rows * _LANE
    if padded != n_f32:                                   # pad only when the tail is ragged
        flat = jnp.pad(flat, (0, padded - n_f32))
    tiles = flat.reshape(rows, _LANE)

    blk = pl.BlockSpec((row_tile, _LANE), lambda i: (i, 0))
    cost = pl.CostEstimate(flops=6 * rows * _LANE, transcendentals=0,
                           bytes_accessed=8 * rows * _LANE)

    out = pl.pallas_call(
        _complex_affine_kernel,
        out_shape=jax.ShapeDtypeStruct((rows, _LANE), jnp.float32),
        grid=(num_tiles,),
        in_specs=[
            pl.BlockSpec(memory_space=pltpu.MemorySpace.SMEM),   # 4 resident scalars
            blk,                                                 # interleaved re/im tiles
        ],
        out_specs=blk,
        compiler_params=pltpu.CompilerParams(
            dimension_semantics=("parallel",),        # batch axis shards across TCs (v7x)
            vmem_limit_bytes=32 * 1024 * 1024,        # headroom (v5e default is 16 MiB)
        ),
        cost_estimate=cost,
    )(coef, tiles)

    out_flat = out.reshape(-1)
    if padded != n_f32:
        out_flat = out_flat[:n_f32]
    return _from_interleaved_f32(out_flat, x.shape)


def init_params(key):
    """Deterministic complex64 params matching nn.Linear(1,64) and nn.Linear(64,1)."""
    k = jax.random.split(key, 8)

    def cplx(kr, ki, shape, scale):
        return (scale * jax.random.uniform(kr, shape, jnp.float32, -1.0, 1.0)
                + 1j * scale * jax.random.uniform(ki, shape, jnp.float32, -1.0, 1.0)
                ).astype(jnp.complex64)

    # stored as (in_features, out_features); PyTorch stores (out, in) and transposes.
    w1 = cplx(k[0], k[1], (1, 64), 1.0)          # fc1 weight (fan_in = 1)
    b1 = cplx(k[2], k[3], (64,), 1.0)            # fc1 bias
    w2 = cplx(k[4], k[5], (64, 1), 1.0 / 8.0)    # fc2 weight (fan_in = 64)
    b2 = cplx(k[6], k[7], (1,), 1.0 / 8.0)       # fc2 bias
    return (w1, b1, w2, b2)


if __name__ == "__main__":
    key = jax.random.PRNGKey(0)
    pkey, xkey = jax.random.split(key)
    params = init_params(pkey)
    w1, b1, w2, b2 = params

    def ref_forward(xc):
        return (xc @ w1 + b1) @ w2 + b2          # layer-by-layer complex reference

    # Pallas path: a tiny single-tile batch and a ragged multi-tile batch.
    for B in (8, 1000):
        kr, ki = jax.random.split(jax.random.fold_in(xkey, B))
        x = (jax.random.normal(kr, (B, 1), jnp.float32)
             + 1j * jax.random.normal(ki, (B, 1), jnp.float32)).astype(jnp.complex64)
        y = jax.block_until_ready(basic_nn_forward(x, params, force_pallas=True))
        assert y.shape == (B, 1) and y.dtype == jnp.complex64
        assert jnp.allclose(y, ref_forward(x), atol=1e-4, rtol=1e-4), f"mismatch at B={B}"

    # Default small-batch fast path (no Pallas launch) must agree as well.
    kr, ki = jax.random.split(jax.random.fold_in(xkey, 0))
    xs = (jax.random.normal(kr, (8, 1), jnp.float32)
          + 1j * jax.random.normal(ki, (8, 1), jnp.float32)).astype(jnp.complex64)
    ys = jax.block_until_ready(basic_nn_forward(xs, params))
    assert ys.shape == (8, 1) and ys.dtype == jnp.complex64
    assert jnp.allclose(ys, ref_forward(xs), atol=1e-4, rtol=1e-4)

    print("KERNEL_OK")
</pallas_src>

<mosaic_0001>
module attributes {stable_mosaic.version = 11 : i64} {
  func.func @_complex_affine_kernel(%arg0: i32, %arg1: memref<4xf32, #tpu.memory_space<smem>>, %arg2: memref<8x128xf32, #tpu.memory_space<vmem>>, %arg3: memref<8x128xf32, #tpu.memory_space<vmem>>) attributes {dimension_semantics = [#tpu.dimension_semantics<parallel>], iteration_bounds = array<i64: 1>, scalar_prefetch = 0 : i64, scratch_operands = 0 : i64, tpu.core_type = #tpu.core_type<tc>, window_params = [{transform_indices = @transform_0, window_bounds = array<i64: 4>}, {transform_indices = @transform_1, window_bounds = array<i64: 8, 128>}, {transform_indices = @transform_2, window_bounds = array<i64: 8, 128>}]} {
    %c0 = arith.constant 0 : index
    %0 = memref.load %arg1[%c0] : memref<4xf32, #tpu.memory_space<smem>>
    %c1 = arith.constant 1 : index
    %1 = memref.load %arg1[%c1] : memref<4xf32, #tpu.memory_space<smem>>
    %c2 = arith.constant 2 : index
    %2 = memref.load %arg1[%c2] : memref<4xf32, #tpu.memory_space<smem>>
    %c3 = arith.constant 3 : index
    %3 = memref.load %arg1[%c3] : memref<4xf32, #tpu.memory_space<smem>>
    %c0_0 = arith.constant 0 : index
    %c0_1 = arith.constant 0 : index
    %4 = vector.load %arg2[%c0_0, %c0_1] : memref<8x128xf32, #tpu.memory_space<vmem>>, vector<8x128xf32>
    %5 = tpu.iota {dimensions = array<i32: 1>} : vector<8x128xi32>
    %c2_i32 = arith.constant 2 : i32
    %c0_i32 = arith.constant 0 : i32
    %6 = arith.cmpi eq, %c2_i32, %c0_i32 : i32
    %c1_i32 = arith.constant 1 : i32
    %7 = arith.select %6, %c1_i32, %c2_i32 : i32
    %8 = vector.broadcast %7 : i32 to vector<8x128xi32>
    %9 = arith.remsi %5, %8 : vector<8x128xi32>
    %c0_i32_2 = arith.constant 0 : i32
    %10 = vector.broadcast %c0_i32_2 : i32 to vector<8x128xi32>
    %11 = arith.cmpi ne, %9, %10 : vector<8x128xi32>
    %c0_i32_3 = arith.constant 0 : i32
    %12 = vector.broadcast %c0_i32_3 : i32 to vector<8x128xi32>
    %13 = arith.cmpi slt, %9, %12 : vector<8x128xi32>
    %c0_i32_4 = arith.constant 0 : i32
    %14 = arith.cmpi slt, %7, %c0_i32_4 : i32
    %15 = vector.broadcast %14 : i1 to vector<8x128xi1>
    %16 = vector.broadcast %15 : vector<8x128xi1> to vector<8x128xi1>
    %17 = arith.xori %13, %16 : vector<8x128xi1>
    %18 = arith.andi %17, %11 : vector<8x128xi1>
    %19 = vector.broadcast %7 : i32 to vector<8x128xi32>
    %20 = arith.addi %9, %19 : vector<8x128xi32>
    %21 = arith.select %18, %20, %9 : vector<8x128xi1>, vector<8x128xi32>
    %c0_i32_5 = arith.constant 0 : i32
    %22 = vector.broadcast %c0_i32_5 : i32 to vector<8x128xi32>
    %23 = arith.cmpi eq, %21, %22 : vector<8x128xi32>
    %c127_i32 = arith.constant 127 : i32
    %24 = tpu.dynamic_rotate %4 by %c127_i32 dim 1 : vector<8x128xf32>, i32 -> vector<8x128xf32>
    %c1_i32_6 = arith.constant 1 : i32
    %25 = tpu.dynamic_rotate %4 by %c1_i32_6 dim 1 : vector<8x128xf32>, i32 -> vector<8x128xf32>
    %26 = arith.select %23, %24, %25 : vector<8x128xi1>, vector<8x128xf32>
    %cst = arith.constant 0.000000e+00 : f32
    %27 = arith.subf %cst, %1 : f32
    %28 = vector.broadcast %27 : f32 to vector<8x128xf32>
    %29 = vector.broadcast %1 : f32 to vector<8x128xf32>
    %30 = arith.select %23, %28, %29 : vector<8x128xi1>, vector<8x128xf32>
    %31 = vector.broadcast %2 : f32 to vector<8x128xf32>
    %32 = vector.broadcast %3 : f32 to vector<8x128xf32>
    %33 = arith.select %23, %31, %32 : vector<8x128xi1>, vector<8x128xf32>
    %34 = vector.broadcast %0 : f32 to vector<8x128xf32>
    %35 = arith.mulf %34, %4 : vector<8x128xf32>
    %36 = arith.mulf %30, %26 : vector<8x128xf32>
    %37 = arith.addf %35, %36 : vector<8x128xf32>
    %38 = arith.addf %37, %33 : vector<8x128xf32>
    %c0_7 = arith.constant 0 : index
    %c0_8 = arith.constant 0 : index
    %39 = vector.load %arg3[%c0_7, %c0_8] : memref<8x128xf32, #tpu.memory_space<vmem>>, vector<8x128xf32>
    tpu.vector_store %arg3[%c0_7, %c0_8], %38 {strides = array<i32>} : memref<8x128xf32, #tpu.memory_space<vmem>>, vector<8x128xf32>,
    return
  }
  func.func @transform_0(%arg0: i32) -> i32 {
    %c0_i32 = arith.constant 0 : i32
    %c0_i32_0 = arith.constant 0 : i32
    return %c0_i32 : i32
  }
  func.func @transform_1(%arg0: i32) -> (i32, i32) {
    %c0_i32 = arith.constant 0 : i32
    %c0_i32_0 = arith.constant 0 : i32
    return %arg0, %c0_i32 : i32, i32
  }
  func.func @transform_2(%arg0: i32) -> (i32, i32) {
    %c0_i32 = arith.constant 0 : i32
    %c0_i32_0 = arith.constant 0 : i32
    return %arg0, %c0_i32 : i32, i32
  }
}

</mosaic_0001>

<llo_original>
// kernel: tpu_custom_call.1
$region0: #{tpu_custom_call.1}
  #allocation0 [shape = 'u32[]', space=smem, size = 0x4, offset = 0x4, fixed_abs, tag = 'smem constant byte address 0x4 - core index']
  #allocation1 [shape = 'u32[72,128]{1,0:T(1,128)}', space=vmem, size = 0x9000, scoped, tag = 'internal scratch']
  %s0 = inlined_call_operand.hbm [shape: f32[4], index: 0, kind: input, shape index: {}]
  %s1 = inlined_call_operand.hbm [shape: f32[8,128], index: 1, kind: input, shape index: {}]
  %s2 = inlined_call_operand.hbm [shape: f32[8,128], index: 2, kind: output, shape index: {}]
  %s3 = sld [smem:[#allocation0]]
  $region26: #{tpu_custom_call.1} parent=0
    _
  %s5 = ssub.s32 1, %s3
  %s6 = scalar_select 0, %s5, %s3
  $region1: #{tpu_custom_call.1} parent=0
    #allocation2 [shape = 'u8[512]{0}', space=smem, size = 0x200, scoped, tag = 'input window, operand 0, single buffered']
    #allocation3 [shape = 's32[1]{0}', space=sflag, size = 0x4, scoped, tag = 'scoped memory for tpu_custom_call.1']
    #allocation4 [shape = 's32[1]{0}', space=sflag, size = 0x4, scoped, tag = 'scoped memory for tpu_custom_call.1']
    #allocation5 [shape = 's32[1]{0}', space=sflag, size = 0x4, scoped, tag = 'scoped memory for tpu_custom_call.1']
    #allocation6 [shape = 'u8[4096]{0}', space=vmem, size = 0x1000, scoped, tag = 'input window, operand 1, single buffered']
    #allocation7 [shape = 'u8[4096]{0}', space=vmem, size = 0x1000, scoped, tag = 'output window, operand 0, single buffered']
    %7 = vsyncpa [#allocation5], 0
    %8 = vsyncpa [#allocation3], 0
    %9 = vsyncpa [#allocation4], 0
    // Predicated region
    $region2: #{tpu_custom_call.1} parent=1 // pred_check
      _
    $region3: #{tpu_custom_call.1} parent=1 // pred_check_branch
      %11 = sbr.rel (0) target = $region5
    $region4: #{tpu_custom_call.1} parent=1 // pred_region
      %13 = vsyncadd [#allocation5], 0
      %s15 = sshll.u32 %s0, 4
      %s16 = int_to_ptr.hbm [resolvable:$true] %s15
      %18 = dma.hbm_to_smem %s16, 16, [#allocation2], [#allocation5]
    $region5: #{tpu_custom_call.1} parent=1 // pred_fallthru
      _
    // Predicated region
    $region6: #{tpu_custom_call.1} parent=1 // pred_check
      _
    $region7: #{tpu_custom_call.1} parent=1 // pred_check_branch
      %20 = sbr.rel (0) target = $region9
    $region8: #{tpu_custom_call.1} parent=1 // pred_region
      %22 = vsyncadd [#allocation3], 0
      %s24 = sshll.u32 %s1, 4
      %s25 = int_to_ptr.hbm [resolvable:$true] %s24
      %s26 = sshll.u32 [#allocation6], 4
      %s27 = int_to_ptr.vmem [resolvable:$true] %s26
      %29 = dma.hbm_to_vmem [thread:$0]  %s25, 128, %s27, [#allocation3]
    $region9: #{tpu_custom_call.1} parent=1 // pred_fallthru
      _
    // Predicated region
    $region10: #{tpu_custom_call.1} parent=1 // pred_check
      _
    $region11: #{tpu_custom_call.1} parent=1 // pred_check_branch
      %31 = sbr.rel (0) target = $region13
    $region12: #{tpu_custom_call.1} parent=1 // pred_region
      %33 = dma.done [#allocation5], 16
    $region13: #{tpu_custom_call.1} parent=1 // pred_fallthru
      _
    // Predicated region
    $region14: #{tpu_custom_call.1} parent=1 // pred_check
      _
    $region15: #{tpu_custom_call.1} parent=1 // pred_check_branch
      %35 = sbr.rel (0) target = $region17
    $region16: #{tpu_custom_call.1} parent=1 // pred_region
      %37 = dma.done [#allocation3], 128
    $region17: #{tpu_custom_call.1} parent=1 // pred_fallthru
      _
    %38 = sfence
    %s39 = sld [smem:[#allocation2]]
    %s40 = sld [smem:[#allocation2 + $0x1]]
    %s41 = sld [smem:[#allocation2 + $0x2]]
    %s42 = sld [smem:[#allocation2 + $0x3]]
    %v43 = vld [vmem:[#allocation6] sm:$0xff]
    %v44 = vlaneseq
    %v45 = vand.u32 %v44, 127
    %vm46 = vcmp.lt.s32.totalorder %v45, 0
    %v47 = vsub.s32 0, %v45
    %v48 = vsel %vm46, %v47, %v45
    %v49 = vshrl.u32 %v48, 1
    %v50 = vand.u32 %v48, 1
    %v51 = vsub.s32 0, %v50
    %v52 = vsel %vm46, %v51, %v50
    %vm53 = vcmp.ne.s32.totalorder %v52, 0
    %vm54 = vcmp.lt.s32.totalorder %v52, 0
    %vm55 = vmand %vm54, %vm53
    %v56 = vadd.s32 %v52, 2
    %v57 = vsel %vm55, %v56, %v52
    %vm58 = vcmp.eq.s32.totalorder %v57, 0
    %59 = vrot.lane.b32.xlu0 %v43, 127
    %v60 = vpop.permute.xlu0 %59
    %61 = vrot.lane.b32.xlu0 %v43, 1
    %v62 = vpop.permute.xlu0 %61
    %v63 = vsel %vm58, %v60, %v62
    %s64 = ssub.f32 0.0, %s40
    %v65 = vstv %s64
    %v66 = vstv %s40
    %v67 = vsel %vm58, %v65, %v66
    %v68 = vstv %s41
    %v69 = vstv %s42
    %v70 = vsel %vm58, %v68, %v69
    %v71 = vstv %s39
    %v72 = vmul.f32 %v71, %v43
    %v73 = vmul.f32 %v67, %v63
    %v74 = vadd.f32 %v72, %v73
    %v75 = vadd.f32 %v74, %v70
    %76 = vst [vmem:[#allocation7] sm:$0xff] %v75
    // Predicated region
    $region18: #{tpu_custom_call.1} parent=1 // pred_check
      _
    $region19: #{tpu_custom_call.1} parent=1 // pred_check_branch
      %78 = sbr.rel (0) target = $region21
    $region20: #{tpu_custom_call.1} parent=1 // pred_region
      %80 = vsyncadd [#allocation4], 0
      %s82 = sshll.u32 [#allocation7], 4
      %s83 = int_to_ptr.vmem [resolvable:$true] %s82
      %s84 = sshll.u32 %s2, 4
      %s85 = int_to_ptr.hbm [resolvable:$true] %s84
      %87 = dma.vmem_to_hbm [thread:$0]  %s83, 128, %s85, [#allocation4]
    $region21: #{tpu_custom_call.1} parent=1 // pred_fallthru
      _
    // Predicated region
    $region22: #{tpu_custom_call.1} parent=1 // pred_check
      _
    $region23: #{tpu_custom_call.1} parent=1 // pred_check_branch
      %89 = sbr.rel (0) target = $region25
    $region24: #{tpu_custom_call.1} parent=1 // pred_region
      %91 = dma.done [#allocation4], 128
    $region25: #{tpu_custom_call.1} parent=1 // pred_fallthru
      _
    %92 = vsyncpa [#allocation3], 1
    %93 = vsyncpa [#allocation4], 1
    %94 = vsyncpa [#allocation5], 1

</llo_original>
